<compile_context>
chip_gen: v7x
topology: tpu7x:2x2x1
jax: 0.10.0
libtpu: 0.0.40
codegen_flags: <defaults>
</compile_context>

<pallas_src>
import jax
import jax.numpy as jnp
from jax.experimental import pallas as pl
from jax.experimental.pallas import tpu as pltpu

LATENT = 32
H1 = 128
H2 = 256
OUT = 784  # 28*28; used as a full-array last dim (exempt from 128-divisibility)


def _round_up(x, m):
    return (x + m - 1) // m * m


def decoder_kernel(z_ref, w1_ref, b1_ref, w2_ref, b2_ref, w3h_ref, b3h_ref, o_ref):
    # fc1 + relu   (bf16 operands, f32 MXU accumulation)
    h1 = jnp.dot(z_ref[...], w1_ref[...], preferred_element_type=jnp.float32)
    h1 = jnp.maximum(h1 + b1_ref[...], 0.0)
    # fc2 + relu
    h2 = jnp.dot(h1.astype(jnp.bfloat16), w2_ref[...],
                 preferred_element_type=jnp.float32)
    h2 = jnp.maximum(h2 + b2_ref[...], 0.0)
    # fc3 + sigmoid.  sigmoid(x) = 0.5*tanh(x/2) + 0.5; the 1/2 is pre-folded
    # into w3h/b3h (prepare_params), so the epilogue is one EUP tanh plus a
    # single FMA over the 784-wide logits.
    half = jnp.dot(h2.astype(jnp.bfloat16), w3h_ref[...],
                   preferred_element_type=jnp.float32)
    half = half + b3h_ref[...]
    o_ref[...] = (0.5 * jnp.tanh(half) + 0.5).astype(o_ref.dtype)


def decoder_forward(z, params, *, tb=1024):
    """z: (B, 32) float -> (B, 1, 28, 28) bfloat16 (NCHW, like x.view(B,1,28,28)).

    Output is bf16 by design (kernel is output-bandwidth bound); cast to f32 in
    the consumer if needed so the cast fuses downstream.
    """
    w1, b1, w2, b2, w3h, b3h = params
    B = z.shape[0]

    # ---- balanced batch tiling ----
    # Pad only to the bf16 sublane multiple (16), then split into balanced
    # tiles.  Force an even number of >=2 grid steps whenever B >= 32 so the
    # "parallel" batch axis shards across both v7x TensorCores.
    B16 = _round_up(max(B, 16), 16)
    n_tiles = max(pl.cdiv(B16, tb), 2 if B16 >= 32 else 1)
    if n_tiles > 1:
        n_tiles = _round_up(n_tiles, 2)
    TB = _round_up(pl.cdiv(B16, n_tiles), 16)
    B_pad = _round_up(B16, TB)
    grid = (B_pad // TB,)

    # bf16 latents, zero-padded rows (jit-fused with the caller).
    z_p = jnp.zeros((B_pad, LATENT), jnp.bfloat16).at[:B, :].set(
        z.astype(jnp.bfloat16))

    # Weights/biases: same block index on every grid step -> VMEM-resident,
    # fetched from HBM exactly once.
    resident = lambda shape: pl.BlockSpec(shape, lambda i: (0, 0))

    bytes_accessed = (z_p.size * 2                              # bf16 latents
                      + (w1.size + w2.size + w3h.size) * 2      # bf16 weights
                      + (b1.size + b2.size + b3h.size) * 4      # f32 biases
                      + B_pad * OUT * 2)                        # bf16 output
    cost = pl.CostEstimate(
        flops=2 * B_pad * (LATENT * H1 + H1 * H2 + H2 * OUT),
        transcendentals=B_pad * OUT,
        bytes_accessed=bytes_accessed,
    )

    out_flat = pl.pallas_call(
        decoder_kernel,
        out_shape=jax.ShapeDtypeStruct((B_pad, OUT), jnp.bfloat16),
        grid=grid,
        in_specs=[
            pl.BlockSpec((TB, LATENT), lambda i: (i, 0)),
            resident(w1.shape), resident(b1.shape),
            resident(w2.shape), resident(b2.shape),
            resident(w3h.shape), resident(b3h.shape),
        ],
        out_specs=pl.BlockSpec((TB, OUT), lambda i: (i, 0)),
        compiler_params=pltpu.CompilerParams(
            dimension_semantics=("parallel",),
            # Explicit so TB=1024 also fits v5e's 16 MiB scoped default;
            # working set at TB=1024 is ~10-11 MiB, well under v7x's 64 MiB.
            vmem_limit_bytes=32 * 1024 * 1024,
        ),
        cost_estimate=cost,
    )(z_p, w1, b1, w2, b2, w3h, b3h)

    # Row-depad (a no-op when B_pad == B) + NCHW view.  No lane depad, no
    # dtype cast: no extra full-size copy behind the kernel.
    return out_flat[:B].reshape(B, 1, 28, 28)


def init_params(key):
    """Deterministic synthetic f32 parameters with nn.Linear-equivalent math.

    PyTorch nn.Linear(in, out) stores weight as (out, in); we keep the math
    identical by storing the transposed (in, out) matrix and computing z @ W.
    Biases are kept 2D (1, out) for TPU-friendly broadcasting.
    """
    dims = [(LATENT, H1), (H1, H2), (H2, OUT)]
    params = []
    for fan_in, fan_out in dims:
        kw, kb, key = jax.random.split(key, 3)
        bound = 1.0 / jnp.sqrt(float(fan_in))
        w = jax.random.uniform(kw, (fan_in, fan_out), jnp.float32, -bound, bound)
        b = jax.random.uniform(kb, (1, fan_out), jnp.float32, -bound, bound)
        params += [w, b]
    return tuple(params)


def prepare_params(raw):
    """One-time transform: bf16 weights (MXU-native, half the HBM traffic),
    f32 biases, and the sigmoid 1/2 pre-folded into fc3 (exact power-of-2
    scale, so numerically equivalent)."""
    w1, b1, w2, b2, w3, b3 = raw
    return (w1.astype(jnp.bfloat16), b1,
            w2.astype(jnp.bfloat16), b2,
            (0.5 * w3).astype(jnp.bfloat16), 0.5 * b3)


def decoder_reference(z, raw):
    """Pure-JAX reference with the same bf16-weight / f32-accumulate recipe,
    exact sigmoid, f32 output."""
    w1, b1, w2, b2, w3, b3 = raw
    zb = z.astype(jnp.bfloat16)
    h1 = jnp.maximum(
        jnp.dot(zb, w1.astype(jnp.bfloat16),
                preferred_element_type=jnp.float32) + b1, 0.0)
    h2 = jnp.maximum(
        jnp.dot(h1.astype(jnp.bfloat16), w2.astype(jnp.bfloat16),
                preferred_element_type=jnp.float32) + b2, 0.0)
    x = jax.nn.sigmoid(
        jnp.dot(h2.astype(jnp.bfloat16), w3.astype(jnp.bfloat16),
                preferred_element_type=jnp.float32) + b3)
    return x.reshape(z.shape[0], 1, 28, 28)


if __name__ == "__main__":
    key = jax.random.PRNGKey(0)
    kz, kp = jax.random.split(key)

    B = 8  # small batch; latent dim fixed at 32 by the module
    z = jax.random.normal(kz, (B, LATENT), jnp.float32)

    raw_params = init_params(kp)            # f32, nn.Linear-equivalent
    params = prepare_params(raw_params)     # one-time bf16 / 0.5-fold transform

    fwd = jax.jit(decoder_forward)
    out = jax.block_until_ready(fwd(z, params))

    ref = decoder_reference(z, raw_params)
    assert out.shape == (B, 1, 28, 28), out.shape
    assert out.dtype == jnp.bfloat16, out.dtype
    # bf16 output store + tanh-form sigmoid vs f32-output exact-sigmoid ref:
    # differences bounded by bf16 rounding of values in [0, 1].
    assert jnp.allclose(out.astype(jnp.float32), ref, atol=1e-2, rtol=1e-2), \
        "mismatch vs reference"

    print("KERNEL_OK")
</pallas_src>

<mosaic_0001>
module attributes {stable_mosaic.version = 11 : i64} {
  func.func @decoder_kernel(%arg0: i32, %arg1: memref<16x32xbf16, #tpu.memory_space<vmem>>, %arg2: memref<32x128xbf16, #tpu.memory_space<vmem>>, %arg3: memref<1x128xf32, #tpu.memory_space<vmem>>, %arg4: memref<128x256xbf16, #tpu.memory_space<vmem>>, %arg5: memref<1x256xf32, #tpu.memory_space<vmem>>, %arg6: memref<256x784xbf16, #tpu.memory_space<vmem>>, %arg7: memref<1x784xf32, #tpu.memory_space<vmem>>, %arg8: memref<16x784xbf16, #tpu.memory_space<vmem>>) attributes {dimension_semantics = [#tpu.dimension_semantics<parallel>], iteration_bounds = array<i64: 1>, scalar_prefetch = 0 : i64, scratch_operands = 0 : i64, tpu.core_type = #tpu.core_type<tc>, window_params = [{transform_indices = @transform_0, window_bounds = array<i64: 16, 32>}, {pipeline_mode = #tpu.pipeline_mode<synchronous>, transform_indices = @transform_1, window_bounds = array<i64: 32, 128>}, {pipeline_mode = #tpu.pipeline_mode<synchronous>, transform_indices = @transform_2, window_bounds = array<i64: 1, 128>}, {pipeline_mode = #tpu.pipeline_mode<synchronous>, transform_indices = @transform_3, window_bounds = array<i64: 128, 256>}, {pipeline_mode = #tpu.pipeline_mode<synchronous>, transform_indices = @transform_4, window_bounds = array<i64: 1, 256>}, {pipeline_mode = #tpu.pipeline_mode<synchronous>, transform_indices = @transform_5, window_bounds = array<i64: 256, 784>}, {pipeline_mode = #tpu.pipeline_mode<synchronous>, transform_indices = @transform_6, window_bounds = array<i64: 1, 784>}, {transform_indices = @transform_7, window_bounds = array<i64: 16, 784>}]} {
    %c0 = arith.constant 0 : index
    %c0_0 = arith.constant 0 : index
    %0 = vector.load %arg1[%c0, %c0_0] : memref<16x32xbf16, #tpu.memory_space<vmem>>, vector<16x32xbf16>
    %c0_1 = arith.constant 0 : index
    %c0_2 = arith.constant 0 : index
    %1 = vector.load %arg2[%c0_1, %c0_2] : memref<32x128xbf16, #tpu.memory_space<vmem>>, vector<32x128xbf16>
    %cst = arith.constant dense<0.000000e+00> : vector<16x128xf32>
    %2 = tpu.matmul %0, %1, %cst {dimension_numbers = #tpu.dot_dimension_numbers<[1], [0], [0], [1], [0, 0, 1, 1], [], []>} : vector<16x32xbf16>, vector<32x128xbf16>, vector<16x128xf32> -> vector<16x128xf32>
    %c0_3 = arith.constant 0 : index
    %c0_4 = arith.constant 0 : index
    %3 = vector.load %arg3[%c0_3, %c0_4] : memref<1x128xf32, #tpu.memory_space<vmem>>, vector<1x128xf32>
    %4 = vector.broadcast %3 : vector<1x128xf32> to vector<16x128xf32>
    %5 = arith.addf %2, %4 : vector<16x128xf32>
    %cst_5 = arith.constant 0.000000e+00 : f32
    %6 = vector.broadcast %cst_5 : f32 to vector<16x128xf32>
    %7 = arith.maximumf %5, %6 : vector<16x128xf32>
    %8 = arith.truncf %7 : vector<16x128xf32> to vector<16x128xbf16>
    %c0_6 = arith.constant 0 : index
    %c0_7 = arith.constant 0 : index
    %9 = vector.load %arg4[%c0_6, %c0_7] : memref<128x256xbf16, #tpu.memory_space<vmem>>, vector<128x256xbf16>
    %cst_8 = arith.constant dense<0.000000e+00> : vector<16x256xf32>
    %10 = tpu.matmul %8, %9, %cst_8 {dimension_numbers = #tpu.dot_dimension_numbers<[1], [0], [0], [1], [0, 0, 1, 1], [], []>} : vector<16x128xbf16>, vector<128x256xbf16>, vector<16x256xf32> -> vector<16x256xf32>
    %c0_9 = arith.constant 0 : index
    %c0_10 = arith.constant 0 : index
    %11 = vector.load %arg5[%c0_9, %c0_10] : memref<1x256xf32, #tpu.memory_space<vmem>>, vector<1x256xf32>
    %12 = vector.broadcast %11 : vector<1x256xf32> to vector<16x256xf32>
    %13 = arith.addf %10, %12 : vector<16x256xf32>
    %cst_11 = arith.constant 0.000000e+00 : f32
    %14 = vector.broadcast %cst_11 : f32 to vector<16x256xf32>
    %15 = arith.maximumf %13, %14 : vector<16x256xf32>
    %16 = arith.truncf %15 : vector<16x256xf32> to vector<16x256xbf16>
    %c0_12 = arith.constant 0 : index
    %c0_13 = arith.constant 0 : index
    %17 = vector.load %arg6[%c0_12, %c0_13] : memref<256x784xbf16, #tpu.memory_space<vmem>>, vector<256x784xbf16>
    %cst_14 = arith.constant dense<0.000000e+00> : vector<16x784xf32>
    %18 = tpu.matmul %16, %17, %cst_14 {dimension_numbers = #tpu.dot_dimension_numbers<[1], [0], [0], [1], [0, 0, 1, 1], [], []>} : vector<16x256xbf16>, vector<256x784xbf16>, vector<16x784xf32> -> vector<16x784xf32>
    %c0_15 = arith.constant 0 : index
    %c0_16 = arith.constant 0 : index
    %19 = vector.load %arg7[%c0_15, %c0_16] : memref<1x784xf32, #tpu.memory_space<vmem>>, vector<1x784xf32>
    %20 = vector.broadcast %19 : vector<1x784xf32> to vector<16x784xf32>
    %21 = arith.addf %18, %20 : vector<16x784xf32>
    %22 = math.tanh %21 : vector<16x784xf32>
    %cst_17 = arith.constant 5.000000e-01 : f32
    %23 = vector.broadcast %cst_17 : f32 to vector<16x784xf32>
    %24 = arith.mulf %23, %22 : vector<16x784xf32>
    %cst_18 = arith.constant 5.000000e-01 : f32
    %25 = vector.broadcast %cst_18 : f32 to vector<16x784xf32>
    %26 = arith.addf %24, %25 : vector<16x784xf32>
    %27 = arith.truncf %26 : vector<16x784xf32> to vector<16x784xbf16>
    %c0_19 = arith.constant 0 : index
    %c0_20 = arith.constant 0 : index
    %28 = vector.load %arg8[%c0_19, %c0_20] : memref<16x784xbf16, #tpu.memory_space<vmem>>, vector<16x784xbf16>
    tpu.vector_store %arg8[%c0_19, %c0_20], %27 {strides = array<i32>} : memref<16x784xbf16, #tpu.memory_space<vmem>>, vector<16x784xbf16>,
    return
  }
  func.func @transform_0(%arg0: i32) -> (i32, i32) {
    %c0_i32 = arith.constant 0 : i32
    %c0_i32_0 = arith.constant 0 : i32
    return %arg0, %c0_i32 : i32, i32
  }
  func.func @transform_1(%arg0: i32) -> (i32, i32) {
    %c0_i32 = arith.constant 0 : i32
    %c0_i32_0 = arith.constant 0 : i32
    %c0_i32_1 = arith.constant 0 : i32
    return %c0_i32, %c0_i32_0 : i32, i32
  }
  func.func @transform_2(%arg0: i32) -> (i32, i32) {
    %c0_i32 = arith.constant 0 : i32
    %c0_i32_0 = arith.constant 0 : i32
    %c0_i32_1 = arith.constant 0 : i32
    return %c0_i32, %c0_i32_0 : i32, i32
  }
  func.func @transform_3(%arg0: i32) -> (i32, i32) {
    %c0_i32 = arith.constant 0 : i32
    %c0_i32_0 = arith.constant 0 : i32
    %c0_i32_1 = arith.constant 0 : i32
    return %c0_i32, %c0_i32_0 : i32, i32
  }
  func.func @transform_4(%arg0: i32) -> (i32, i32) {
    %c0_i32 = arith.constant 0 : i32
    %c0_i32_0 = arith.constant 0 : i32
    %c0_i32_1 = arith.constant 0 : i32
    return %c0_i32, %c0_i32_0 : i32, i32
  }
  func.func @transform_5(%arg0: i32) -> (i32, i32) {
    %c0_i32 = arith.constant 0 : i32
    %c0_i32_0 = arith.constant 0 : i32
    %c0_i32_1 = arith.constant 0 : i32
    return %c0_i32, %c0_i32_0 : i32, i32
  }
  func.func @transform_6(%arg0: i32) -> (i32, i32) {
    %c0_i32 = arith.constant 0 : i32
    %c0_i32_0 = arith.constant 0 : i32
    %c0_i32_1 = arith.constant 0 : i32
    return %c0_i32, %c0_i32_0 : i32, i32
  }
  func.func @transform_7(%arg0: i32) -> (i32, i32) {
    %c0_i32 = arith.constant 0 : i32
    %c0_i32_0 = arith.constant 0 : i32
    return %arg0, %c0_i32 : i32, i32
  }
}

</mosaic_0001>

<llo_original>
// kernel: decoder_forward.1
$region0: #{decoder_forward.1}
  #allocation0 [shape = 'u32[]', space=smem, size = 0x4, offset = 0x4, fixed_abs, tag = 'smem constant byte address 0x4 - core index']
  #allocation1 [shape = 'u32[144,128]{1,0:T(1,128)}', space=vmem, size = 0x12000, scoped, tag = 'internal scratch']
  %s0 = inlined_call_operand.vmem [shape: bf16[16,32], index: 0, kind: input, shape index: {}]
  %s1 = inlined_call_operand.vmem [shape: bf16[32,128], index: 1, kind: input, shape index: {}]
  %s2 = inlined_call_operand.vmem [shape: f32[1,128], index: 2, kind: input, shape index: {}]
  %s3 = inlined_call_operand.vmem [shape: bf16[128,256], index: 3, kind: input, shape index: {}]
  %s4 = inlined_call_operand.vmem [shape: f32[1,256], index: 4, kind: input, shape index: {}]
  %s5 = inlined_call_operand.vmem [shape: bf16[256,784], index: 5, kind: input, shape index: {}]
  %s6 = inlined_call_operand.vmem [shape: f32[1,784], index: 6, kind: input, shape index: {}]
  %s7 = inlined_call_operand.vmem [shape: bf16[16,784], index: 7, kind: output, shape index: {}]
  %s8 = sld [smem:[#allocation0]]
  $region38: #{decoder_forward.1} parent=0
    _
  %s10 = ssub.s32 1, %s8
  %s11 = scalar_select 0, %s10, %s8
  // Predicated region
  $region2: #{decoder_forward.1} parent=0 // pred_check
    _
  $region3: #{decoder_forward.1} parent=0 // pred_check_branch
    %13 = sbr.rel (0) target = $region5
  $region4: #{decoder_forward.1} parent=0 // pred_region
    _
  $region5: #{decoder_forward.1} parent=0 // pred_fallthru
    _
  // Predicated region
  $region6: #{decoder_forward.1} parent=0 // pred_check
    _
  $region7: #{decoder_forward.1} parent=0 // pred_check_branch
    %15 = sbr.rel (0) target = $region9
  $region8: #{decoder_forward.1} parent=0 // pred_region
    _
  $region9: #{decoder_forward.1} parent=0 // pred_fallthru
    _
  // Predicated region
  $region10: #{decoder_forward.1} parent=0 // pred_check
    _
  $region11: #{decoder_forward.1} parent=0 // pred_check_branch
    %17 = sbr.rel (0) target = $region13
  $region12: #{decoder_forward.1} parent=0 // pred_region
    _
  $region13: #{decoder_forward.1} parent=0 // pred_fallthru
    _
  // Predicated region
  $region14: #{decoder_forward.1} parent=0 // pred_check
    _
  $region15: #{decoder_forward.1} parent=0 // pred_check_branch
    %19 = sbr.rel (0) target = $region17
  $region16: #{decoder_forward.1} parent=0 // pred_region
    _
  $region17: #{decoder_forward.1} parent=0 // pred_fallthru
    _
  // Predicated region
  $region18: #{decoder_forward.1} parent=0 // pred_check
    _
  $region19: #{decoder_forward.1} parent=0 // pred_check_branch
    %21 = sbr.rel (0) target = $region21
  $region20: #{decoder_forward.1} parent=0 // pred_region
    _
  $region21: #{decoder_forward.1} parent=0 // pred_fallthru
    _
  // Predicated region
  $region22: #{decoder_forward.1} parent=0 // pred_check
    _
  $region23: #{decoder_forward.1} parent=0 // pred_check_branch
    %23 = sbr.rel (0) target = $region25
  $region24: #{decoder_forward.1} parent=0 // pred_region
    _
  $region25: #{decoder_forward.1} parent=0 // pred_fallthru
    _
  // Predicated region
  $region26: #{decoder_forward.1} parent=0 // pred_check
    _
  $region27: #{decoder_forward.1} parent=0 // pred_check_branch
    %25 = sbr.rel (0) target = $region29
  $region28: #{decoder_forward.1} parent=0 // pred_region
    _
  $region29: #{decoder_forward.1} parent=0 // pred_fallthru
    _
  %v27 = vld [vmem:[%s0] sm:$0xf]
  %v28 = vld [vmem:[%s0 + $0x4] sm:$0xf]
  %v29 = vld [vmem:[%s1] sm:$0xf]
  %v30 = vld [vmem:[%s1 + $0x4] sm:$0xf]
  %v31 = vld [vmem:[%s1 + $0x8] sm:$0xf]
  %v32 = vld [vmem:[%s1 + $0xc] sm:$0xf]
  %v33 = vld [vmem:[%s2] sm:$0x1]
  %v35 = vlaneseq
  %v36 = vshrl.u32 %v35, 7
  %v37 = vsub.s32 0, %v36
  %v38 = vrot.slane %v33, %v37
  %v42 = vunpack.c.l.b16 %v27
  %v43 = vunpack.c.l.b16 %v28
  %v44 = vpack.c.b16 %v43, %v42
  %v49 = vunpack.c.l.b16 %v29
  %v50 = vunpack.c.l.b16 %v30
  %v51 = vunpack.c.l.b16 %v31
  %v52 = vunpack.c.l.b16 %v32
  %v53 = vpack.c.b16 %v50, %v49
  %v54 = vpack.c.b16 %v52, %v51
  %vm57 = vcmask 261120
  %v59 = vsel %vm57, %v44, 0
  %61 = vmatprep.subr.bf16.mxu0 0
  %62 = vmatpush1.bf16.msra.mxu0 %v53
  %63 = vmatprep.subr.bf16.mxu0 0
  %64 = vmatpush1.bf16.msra.mxu0 %v54
  %65 = vmatprep.subr.bf16.mxu0 0
  %66 = vmatpush1.bf16.msra.mxu0 0
  %67 = vmatprep.subr.bf16.mxu0 0
  %68 = vmatpush1.bf16.msra.mxu0 0
  %69 = vmatprep.subr.bf16.mxu0 0
  %70 = vmatpush1.bf16.msra.mxu0 0
  %71 = vmatprep.subr.bf16.mxu0 0
  %72 = vmatpush1.bf16.msra.mxu0 0
  %73 = vmatprep.subr.bf16.mxu0 0
  %74 = vmatpush1.bf16.msra.mxu0 0
  %75 = vmatprep.subr.bf16.mxu0 0
  %76 = vmatpush1.bf16.msra.mxu0 0
  %77 = vmatprep.subr.bf16.mxu0 0
  %78 = vmatpush1.bf16.msra.mxu0 0
  %79 = vmatprep.subr.bf16.mxu0 0
  %80 = vmatpush1.bf16.msra.mxu0 0
  %81 = vmatprep.subr.bf16.mxu0 0
  %82 = vmatpush1.bf16.msra.mxu0 0
  %83 = vmatprep.subr.bf16.mxu0 0
  %84 = vmatpush1.bf16.msra.mxu0 0
  %85 = vmatprep.subr.bf16.mxu0 0
  %86 = vmatpush1.bf16.msra.mxu0 0
  %87 = vmatprep.subr.bf16.mxu0 0
  %88 = vmatpush1.bf16.msra.mxu0 0
  %89 = vmatprep.subr.bf16.mxu0 0
  %90 = vmatpush1.bf16.msra.mxu0 0
  %91 = vmatprep.subr.bf16.mxu0 0
  %92 = vmatpush1.bf16.msra.mxu0 0
  %93 = vmatprep.mubr.bf16.mxu0 0
  %94 = vmatmul.mubr.bf16.gmra.mrb[0].mxu0 %v59
  %v95 = vpop.f32.mrb[0].mxu0
  %v96 = vadd.f32 %v38, %v95
  %v97 = vpop.f32.mrb[0].mxu0
  %v98 = vpop.f32.mrb[0].mxu0
  %v99 = vadd.f32 %v38, %v98
  %v100 = vpop.f32.mrb[0].mxu0
  %101 = vdwg.mxu0
  %v102 = vmax.f32 %v96, 0.0
  %v103 = vmax.f32 %v99, 0.0
  %v104 = vpack.c.bf16 %v103, %v102
  %v105 = vld [vmem:[%s3] sm:$0xff]
  %v106 = vld [vmem:[%s3 + $0x8] sm:$0xff]
  %v107 = vld [vmem:[%s3 + $0x10] sm:$0xff]
  %v108 = vld [vmem:[%s3 + $0x18] sm:$0xff]
  %v109 = vld [vmem:[%s3 + $0x20] sm:$0xff]
  %v110 = vld [vmem:[%s3 + $0x28] sm:$0xff]
  %v111 = vld [vmem:[%s3 + $0x30] sm:$0xff]
  %v112 = vld [vmem:[%s3 + $0x38] sm:$0xff]
  %v113 = vld [vmem:[%s3 + $0x40] sm:$0xff]
  %v114 = vld [vmem:[%s3 + $0x48] sm:$0xff]
  %v115 = vld [vmem:[%s3 + $0x50] sm:$0xff]
  %v116 = vld [vmem:[%s3 + $0x58] sm:$0xff]
  %v117 = vld [vmem:[%s3 + $0x60] sm:$0xff]
  %v118 = vld [vmem:[%s3 + $0x68] sm:$0xff]
  %v119 = vld [vmem:[%s3 + $0x70] sm:$0xff]
  %v120 = vld [vmem:[%s3 + $0x78] sm:$0xff]
  %v121 = vld [vmem:[%s4] sm:$0x3]
  %v123 = vlaneseq
  %v124 = vshrl.u32 %v123, 7
  %v125 = vsub.s32 0, %v124
  %v126 = vrot.slane %v121, %v125
  %v127 = vlaneseq
  %v128 = vshrl.u32 %v127, 7
  %v129 = vsub.s32 1, %v128
  %v130 = vrot.slane %v121, %v129
  %v149 = vunpack.c.l.b16 %v105
  %v150 = vunpack.c.h.b16 %v105
  %v151 = vunpack.c.l.b16 %v106
  %v152 = vunpack.c.h.b16 %v106
  %v153 = vunpack.c.l.b16 %v107
  %v154 = vunpack.c.h.b16 %v107
  %v155 = vunpack.c.l.b16 %v108
  %v156 = vunpack.c.h.b16 %v108
  %v157 = vunpack.c.l.b16 %v109
  %v158 = vunpack.c.h.b16 %v109
  %v159 = vunpack.c.l.b16 %v110
  %v160 = vunpack.c.h.b16 %v110
  %v161 = vunpack.c.l.b16 %v111
  %v162 = vunpack.c.h.b16 %v111
  %v163 = vunpack.c.l.b16 %v112
  %v164 = vunpack.c.h.b16 %v112
  %v165 = vunpack.c.l.b16 %v113
  %v166 = vunpack.c.h.b16 %v113
  %v167 = vunpack.c.l.b16 %v114
  %v168 = vunpack.c.h.b16 %v114
  %v169 = vunpack.c.l.b16 %v115
  %v170 = vunpack.c.h.b16 %v115
  %v171 = vunpack.c.l.b16 %v116
  %v172 = vunpack.c.h.b16 %v116
  %v173 = vunpack.c.l.b16 %v117
  %v174 = vunpack.c.h.b16 %v117
  %v175 = vunpack.c.l.b16 %v118
  %v176 = vunpack.c.h.b16 %v118
  %v177 = vunpack.c.l.b16 %v119
  %v178 = vunpack.c.h.b16 %v119
  %v179 = vunpack.c.l.b16 %v120
  %v180 = vunpack.c.h.b16 %v120
  %v181 = vpack.c.b16 %v151, %v149
  %v182 = vpack.c.b16 %v152, %v150
  %v183 = vpack.c.b16 %v155, %v153
  %v184 = vpack.c.b16 %v156, %v154
  %v185 = vpack.c.b16 %v159, %v157
  %v186 = vpack.c.b16 %v160, %v158
  %v187 = vpack.c.b16 %v163, %v161
  %v188 = vpack.c.b16 %v164, %v162
  %v189 = vpack.c.b16 %v167, %v165
  %v190 = vpack.c.b16 %v168, %v166
  %v191 = vpack.c.b16 %v171, %v169
  %v192 = vpack.c.b16 %v172, %v170
  %v193 = vpack.c.b16 %v175, %v173
  %v194 = vpack.c.b16 %v176, %v174
  %v195 = vpack.c.b16 %v179, %v177
  %v196 = vpack.c.b16 %v180, %v178
  %213 = vmatprep.subr.bf16.mxu0 %v182
  %214 = vmatpush1.bf16.msra.mxu0 %v181
  %215 = vmatprep.subr.bf16.mxu0 %v184
  %216 = vmatpush1.bf16.msra.mxu0 %v183
  %217 = vmatprep.subr.bf16.mxu0 %v186
  %218 = vmatpush1.bf16.msra.mxu0 %v185
  %219 = vmatprep.subr.bf16.mxu0 %v188
  %220 = vmatpush1.bf16.msra.mxu0 %v187
  %221 = vmatprep.subr.bf16.mxu0 %v190
  %222 = vmatpush1.bf16.msra.mxu0 %v189
  %223 = vmatprep.subr.bf16.mxu0 %v192
  %224 = vmatpush1.bf16.msra.mxu0 %v191
  %225 = vmatprep.subr.bf16.mxu0 %v194
  %226 = vmatpush1.bf16.msra.mxu0 %v193
  %227 = vmatprep.subr.bf16.mxu0 %v196
  %228 = vmatpush1.bf16.msra.mxu0 %v195
  %229 = vmatprep.subr.bf16.mxu0 0
  %230 = vmatpush1.bf16.msra.mxu0 0
  %231 = vmatprep.subr.bf16.mxu0 0
  %232 = vmatpush1.bf16.msra.mxu0 0
  %233 = vmatprep.subr.bf16.mxu0 0
  %234 = vmatpush1.bf16.msra.mxu0 0
  %235 = vmatprep.subr.bf16.mxu0 0
  %236 = vmatpush1.bf16.msra.mxu0 0
  %237 = vmatprep.subr.bf16.mxu0 0
  %238 = vmatpush1.bf16.msra.mxu0 0
  %239 = vmatprep.subr.bf16.mxu0 0
  %240 = vmatpush1.bf16.msra.mxu0 0
  %241 = vmatprep.subr.bf16.mxu0 0
  %242 = vmatpush1.bf16.msra.mxu0 0
  %243 = vmatprep.subr.bf16.mxu0 0
  %244 = vmatpush1.bf16.msra.mxu0 0
  %245 = vmatprep.mubr.bf16.mxu0 0
  %246 = vmatmul.mubr.bf16.gmra.mrb[0].mxu0 %v104
  %v247 = vpop.f32.mrb[0].mxu0
  %v248 = vadd.f32 %v126, %v247
  %v249 = vpop.f32.mrb[0].mxu0
  %v250 = vadd.f32 %v130, %v249
  %v251 = vpop.f32.mrb[0].mxu0
  %v252 = vadd.f32 %v126, %v251
  %v253 = vpop.f32.mrb[0].mxu0
  %v254 = vadd.f32 %v130, %v253
  %255 = vdwg.mxu0
  %v256 = vmax.f32 %v248, 0.0
  %v257 = vmax.f32 %v250, 0.0
  %v258 = vmax.f32 %v252, 0.0
  %v259 = vmax.f32 %v254, 0.0
  %v260 = vpack.c.bf16 %v258, %v256
  %v261 = vpack.c.bf16 %v259, %v257
  %v262 = vld [vmem:[%s5] sm:$0xff]
  %v263 = vld [vmem:[%s5 + $0x8] sm:$0xff]
  %v264 = vld [vmem:[%s5 + $0x10] sm:$0xff]
  %v265 = vld [vmem:[%s5 + $0x18] sm:$0xf]
  %v266 = vld [vmem:[%s5 + $0x1c] sm:$0xff]
  %v267 = vld [vmem:[%s5 + $0x24] sm:$0xff]
  %v268 = vld [vmem:[%s5 + $0x2c] sm:$0xff]
  %v269 = vld [vmem:[%s5 + $0x34] sm:$0xf]
  %v270 = vld [vmem:[%s5 + $0x38] sm:$0xff]
  %v271 = vld [vmem:[%s5 + $0x40] sm:$0xff]
  %v272 = vld [vmem:[%s5 + $0x48] sm:$0xff]
  %v273 = vld [vmem:[%s5 + $0x50] sm:$0xf]
  %v274 = vld [vmem:[%s5 + $0x54] sm:$0xff]
  %v275 = vld [vmem:[%s5 + $0x5c] sm:$0xff]
  %v276 = vld [vmem:[%s5 + $0x64] sm:$0xff]
  %v277 = vld [vmem:[%s5 + $0x6c] sm:$0xf]
  %v278 = vld [vmem:[%s5 + $0x70] sm:$0xff]
  %v279 = vld [vmem:[%s5 + $0x78] sm:$0xff]
  %v280 = vld [vmem:[%s5 + $0x80] sm:$0xff]
  %v281 = vld [vmem:[%s5 + $0x88] sm:$0xf]
  %v282 = vld [vmem:[%s5 + $0x8c] sm:$0xff]
  %v283 = vld [vmem:[%s5 + $0x94] sm:$0xff]
  %v284 = vld [vmem:[%s5 + $0x9c] sm:$0xff]
  %v285 = vld [vmem:[%s5 + $0xa4] sm:$0xf]
  %v286 = vld [vmem:[%s5 + $0xa8] sm:$0xff]
  %v287 = vld [vmem:[%s5 + $0xb0] sm:$0xff]
  %v288 = vld [vmem:[%s5 + $0xb8] sm:$0xff]
  %v289 = vld [vmem:[%s5 + $0xc0] sm:$0xf]
  %v290 = vld [vmem:[%s5 + $0xc4] sm:$0xff]
  %v291 = vld [vmem:[%s5 + $0xcc] sm:$0xff]
  %v292 = vld [vmem:[%s5 + $0xd4] sm:$0xff]
  %v293 = vld [vmem:[%s5 + $0xdc] sm:$0xf]
  %v294 = vld [vmem:[%s5 + $0xe0] sm:$0xff]
  %v295 = vld [vmem:[%s5 + $0xe8] sm:$0xff]
  %v296 = vld [vmem:[%s5 + $0xf0] sm:$0xff]
  %v297 = vld [vmem:[%s5 + $0xf8] sm:$0xf]
  %v298 = vld [vmem:[%s5 + $0xfc] sm:$0xff]
  %v299 = vld [vmem:[%s5 + $0x104] sm:$0xff]
  %v300 = vld [vmem:[%s5 + $0x10c] sm:$0xff]
  %v301 = vld [vmem:[%s5 + $0x114] sm:$0xf]
  %v302 = vld [vmem:[%s5 + $0x118] sm:$0xff]
  %v303 = vld [vmem:[%s5 + $0x120] sm:$0xff]
  %v304 = vld [vmem:[%s5 + $0x128] sm:$0xff]
  %v305 = vld [vmem:[%s5 + $0x130] sm:$0xf]
  %v306 = vld [vmem:[%s5 + $0x134] sm:$0xff]
  %v307 = vld [vmem:[%s5 + $0x13c] sm:$0xff]
  %v308 = vld [vmem:[%s5 + $0x144] sm:$0xff]
  %v309 = vld [vmem:[%s5 + $0x14c] sm:$0xf]
  %v310 = vld [vmem:[%s5 + $0x150] sm:$0xff]
  %v311 = vld [vmem:[%s5 + $0x158] sm:$0xff]
  %v312 = vld [vmem:[%s5 + $0x160] sm:$0xff]
  %v313 = vld [vmem:[%s5 + $0x168] sm:$0xf]
  %v314 = vld [vmem:[%s5 + $0x16c] sm:$0xff]
  %v315 = vld [vmem:[%s5 + $0x174] sm:$0xff]
  %v316 = vld [vmem:[%s5 + $0x17c] sm:$0xff]
  %v317 = vld [vmem:[%s5 + $0x184] sm:$0xf]
  %v318 = vld [vmem:[%s5 + $0x188] sm:$0xff]
  %v319 = vld [vmem:[%s5 + $0x190] sm:$0xff]
  %v320 = vld [vmem:[%s5 + $0x198] sm:$0xff]
  %v321 = vld [vmem:[%s5 + $0x1a0] sm:$0xf]
  %v322 = vld [vmem:[%s5 + $0x1a4] sm:$0xff]
  %v323 = vld [vmem:[%s5 + $0x1ac] sm:$0xff]
  %v324 = vld [vmem:[%s5 + $0x1b4] sm:$0xff]
  %v325 = vld [vmem:[%s5 + $0x1bc] sm:$0xf]
  %v326 = vld [vmem:[%s5 + $0x1c0] sm:$0xff]
  %v327 = vld [vmem:[%s5 + $0x1c8] sm:$0xff]
  %v328 = vld [vmem:[%s5 + $0x1d0] sm:$0xff]
  %v329 = vld [vmem:[%s5 + $0x1d8] sm:$0xf]
  %v330 = vld [vmem:[%s5 + $0x1dc] sm:$0xff]
  %v331 = vld [vmem:[%s5 + $0x1e4] sm:$0xff]
  %v332 = vld [vmem:[%s5 + $0x1ec] sm:$0xff]
  %v333 = vld [vmem:[%s5 + $0x1f4] sm:$0xf]
  %v334 = vld [vmem:[%s5 + $0x1f8] sm:$0xff]
  %v335 = vld [vmem:[%s5 + $0x200] sm:$0xff]
  %v336 = vld [vmem:[%s5 + $0x208] sm:$0xff]
  %v337 = vld [vmem:[%s5 + $0x210] sm:$0xf]
  %v338 = vld [vmem:[%s5 + $0x214] sm:$0xff]
  %v339 = vld [vmem:[%s5 + $0x21c] sm:$0xff]
  %v340 = vld [vmem:[%s5 + $0x224] sm:$0xff]
  %v341 = vld [vmem:[%s5 + $0x22c] sm:$0xf]
  %v342 = vld [vmem:[%s5 + $0x230] sm:$0xff]
  %v343 = vld [vmem:[%s5 + $0x238] sm:$0xff]
  %v344 = vld [vmem:[%s5 + $0x240] sm:$0xff]
  %v345 = vld [vmem:[%s5 + $0x248] sm:$0xf]
  %v346 = vld [vmem:[%s5 + $0x24c] sm:$0xff]
  %v347 = vld [vmem:[%s5 + $0x254] sm:$0xff]
  %v348 = vld [vmem:[%s5 + $0x25c] sm:$0xff]
  %v349 = vld [vmem:[%s5 + $0x264] sm:$0xf]
  %v350 = vld [vmem:[%s5 + $0x268] sm:$0xff]
  %v351 = vld [vmem:[%s5 + $0x270] sm:$0xff]
  %v352 = vld [vmem:[%s5 + $0x278] sm:$0xff]
  %v353 = vld [vmem:[%s5 + $0x280] sm:$0xf]
  %v354 = vld [vmem:[%s5 + $0x284] sm:$0xff]
  %v355 = vld [vmem:[%s5 + $0x28c] sm:$0xff]
  %v356 = vld [vmem:[%s5 + $0x294] sm:$0xff]
  %v357 = vld [vmem:[%s5 + $0x29c] sm:$0xf]
  %v358 = vld [vmem:[%s5 + $0x2a0] sm:$0xff]
  %v359 = vld [vmem:[%s5 + $0x2a8] sm:$0xff]
  %v360 = vld [vmem:[%s5 + $0x2b0] sm:$0xff]
  %v361 = vld [vmem:[%s5 + $0x2b8] sm:$0xf]
  %v362 = vld [vmem:[%s5 + $0x2bc] sm:$0xff]
  %v363 = vld [vmem:[%s5 + $0x2c4] sm:$0xff]
  %v364 = vld [vmem:[%s5 + $0x2cc] sm:$0xff]
  %v365 = vld [vmem:[%s5 + $0x2d4] sm:$0xf]
  %v366 = vld [vmem:[%s5 + $0x2d8] sm:$0xff]
  %v367 = vld [vmem:[%s5 + $0x2e0] sm:$0xff]
  %v368 = vld [vmem:[%s5 + $0x2e8] sm:$0xff]
  %v369 = vld [vmem:[%s5 + $0x2f0] sm:$0xf]
  %v370 = vld [vmem:[%s5 + $0x2f4] sm:$0xff]
  %v371 = vld [vmem:[%s5 + $0x2fc] sm:$0xff]
  %v372 = vld [vmem:[%s5 + $0x304] sm:$0xff]
  %v373 = vld [vmem:[%s5 + $0x30c] sm:$0xf]
  %v374 = vld [vmem:[%s5 + $0x310] sm:$0xff]
  %v375 = vld [vmem:[%s5 + $0x318] sm:$0xff]
  %v376 = vld [vmem:[%s5 + $0x320] sm:$0xff]
  %v377 = vld [vmem:[%s5 + $0x328] sm:$0xf]
  %v378 = vld [vmem:[%s5 + $0x32c] sm:$0xff]
  %v379 = vld [vmem:[%s5 + $0x334] sm:$0xff]
  %v380 = vld [vmem:[%s5 + $0x33c] sm:$0xff]
  %v381 = vld [vmem:[%s5 + $0x344] sm:$0xf]
  %v382 = vld [vmem:[%s5 + $0x348] sm:$0xff]
  %v383 = vld [vmem:[%s5 + $0x350] sm:$0xff]
  %v384 = vld [vmem:[%s5 + $0x358] sm:$0xff]
  %v385 = vld [vmem:[%s5 + $0x360] sm:$0xf]
  %v386 = vld [vmem:[%s5 + $0x364] sm:$0xff]
  %v387 = vld [vmem:[%s5 + $0x36c] sm:$0xff]
  %v388 = vld [vmem:[%s5 + $0x374] sm:$0xff]
  %v389 = vld [vmem:[%s5 + $0x37c] sm:$0xf]
  %v390 = vld [vmem:[%s6] sm:$0x7f]
  %v392 = vlaneseq
  %v393 = vshrl.u32 %v392, 7
  %v394 = vsub.s32 0, %v393
  %v395 = vrot.slane %v390, %v394
  %v396 = vlaneseq
  %v397 = vshrl.u32 %v396, 7
  %v398 = vsub.s32 1, %v397
  %v399 = vrot.slane %v390, %v398
  %v400 = vlaneseq
  %v401 = vshrl.u32 %v400, 7
  %v402 = vsub.s32 2, %v401
  %v403 = vrot.slane %v390, %v402
  %v404 = vlaneseq
  %v405 = vshrl.u32 %v404, 7
  %v406 = vsub.s32 3, %v405
  %v407 = vrot.slane %v390, %v406
  %v408 = vlaneseq
  %v409 = vshrl.u32 %v408, 7
  %v410 = vsub.s32 4, %v409
  %v411 = vrot.slane %v390, %v410
  %v412 = vlaneseq
  %v413 = vshrl.u32 %v412, 7
  %v414 = vsub.s32 5, %v413
  %v415 = vrot.slane %v390, %v414
  %v416 = vlaneseq
  %v417 = vshrl.u32 %v416, 7
  %v418 = vsub.s32 6, %v417
  %v419 = vrot.slane %v390, %v418
  %v555 = vunpack.c.l.b16 %v262
  %v556 = vunpack.c.h.b16 %v262
  %v557 = vunpack.c.l.b16 %v263
  %v558 = vunpack.c.h.b16 %v263
  %v559 = vunpack.c.l.b16 %v264
  %v560 = vunpack.c.h.b16 %v264
  %v561 = vunpack.c.l.b16 %v265
  %v562 = vunpack.c.l.b16 %v266
  %v563 = vunpack.c.h.b16 %v266
  %v564 = vunpack.c.l.b16 %v267
  %v565 = vunpack.c.h.b16 %v267
  %v566 = vunpack.c.l.b16 %v268
  %v567 = vunpack.c.h.b16 %v268
  %v568 = vunpack.c.l.b16 %v269
  %v569 = vunpack.c.l.b16 %v270
  %v570 = vunpack.c.h.b16 %v270
  %v571 = vunpack.c.l.b16 %v271
  %v572 = vunpack.c.h.b16 %v271
  %v573 = vunpack.c.l.b16 %v272
  %v574 = vunpack.c.h.b16 %v272
  %v575 = vunpack.c.l.b16 %v273
  %v576 = vunpack.c.l.b16 %v274
  %v577 = vunpack.c.h.b16 %v274
  %v578 = vunpack.c.l.b16 %v275
  %v579 = vunpack.c.h.b16 %v275
  %v580 = vunpack.c.l.b16 %v276
  %v581 = vunpack.c.h.b16 %v276
  %v582 = vunpack.c.l.b16 %v277
  %v583 = vunpack.c.l.b16 %v278
  %v584 = vunpack.c.h.b16 %v278
  %v585 = vunpack.c.l.b16 %v279
  %v586 = vunpack.c.h.b16 %v279
  %v587 = vunpack.c.l.b16 %v280
  %v588 = vunpack.c.h.b16 %v280
  %v589 = vunpack.c.l.b16 %v281
  %v590 = vunpack.c.l.b16 %v282
  %v591 = vunpack.c.h.b16 %v282
  %v592 = vunpack.c.l.b16 %v283
  %v593 = vunpack.c.h.b16 %v283
  %v594 = vunpack.c.l.b16 %v284
  %v595 = vunpack.c.h.b16 %v284
  %v596 = vunpack.c.l.b16 %v285
  %v597 = vunpack.c.l.b16 %v286
  %v598 = vunpack.c.h.b16 %v286
  %v599 = vunpack.c.l.b16 %v287
  %v600 = vunpack.c.h.b16 %v287
  %v601 = vunpack.c.l.b16 %v288
  %v602 = vunpack.c.h.b16 %v288
  %v603 = vunpack.c.l.b16 %v289
  %v604 = vunpack.c.l.b16 %v290
  %v605 = vunpack.c.h.b16 %v290
  %v606 = vunpack.c.l.b16 %v291
  %v607 = vunpack.c.h.b16 %v291
  %v608 = vunpack.c.l.b16 %v292
  %v609 = vunpack.c.h.b16 %v292
  %v610 = vunpack.c.l.b16 %v293
  %v611 = vunpack.c.l.b16 %v294
  %v612 = vunpack.c.h.b16 %v294
  %v613 = vunpack.c.l.b16 %v295
  %v614 = vunpack.c.h.b16 %v295
  %v615 = vunpack.c.l.b16 %v296
  %v616 = vunpack.c.h.b16 %v296
  %v617 = vunpack.c.l.b16 %v297
  %v618 = vunpack.c.l.b16 %v298
  %v619 = vunpack.c.h.b16 %v298
  %v620 = vunpack.c.l.b16 %v299
  %v621 = vunpack.c.h.b16 %v299
  %v622 = vunpack.c.l.b16 %v300
  %v623 = vunpack.c.h.b16 %v300
  %v624 = vunpack.c.l.b16 %v301
  %v625 = vunpack.c.l.b16 %v302
  %v626 = vunpack.c.h.b16 %v302
  %v627 = vunpack.c.l.b16 %v303
  %v628 = vunpack.c.h.b16 %v303
  %v629 = vunpack.c.l.b16 %v304
  %v630 = vunpack.c.h.b16 %v304
  %v631 = vunpack.c.l.b16 %v305
  %v632 = vunpack.c.l.b16 %v306
  %v633 = vunpack.c.h.b16 %v306
  %v634 = vunpack.c.l.b16 %v307
  %v635 = vunpack.c.h.b16 %v307
  %v636 = vunpack.c.l.b16 %v308
  %v637 = vunpack.c.h.b16 %v308
  %v638 = vunpack.c.l.b16 %v309
  %v639 = vunpack.c.l.b16 %v310
  %v640 = vunpack.c.h.b16 %v310
  %v641 = vunpack.c.l.b16 %v311
  %v642 = vunpack.c.h.b16 %v311
  %v643 = vunpack.c.l.b16 %v312
  %v644 = vunpack.c.h.b16 %v312
  %v645 = vunpack.c.l.b16 %v313
  %v646 = vunpack.c.l.b16 %v314
  %v647 = vunpack.c.h.b16 %v314
  %v648 = vunpack.c.l.b16 %v315
  %v649 = vunpack.c.h.b16 %v315
  %v650 = vunpack.c.l.b16 %v316
  %v651 = vunpack.c.h.b16 %v316
  %v652 = vunpack.c.l.b16 %v317
  %v653 = vunpack.c.l.b16 %v318
  %v654 = vunpack.c.h.b16 %v318
  %v655 = vunpack.c.l.b16 %v319
  %v656 = vunpack.c.h.b16 %v319
  %v657 = vunpack.c.l.b16 %v320
  %v658 = vunpack.c.h.b16 %v320
  %v659 = vunpack.c.l.b16 %v321
  %v660 = vunpack.c.l.b16 %v322
  %v661 = vunpack.c.h.b16 %v322
  %v662 = vunpack.c.l.b16 %v323
  %v663 = vunpack.c.h.b16 %v323
  %v664 = vunpack.c.l.b16 %v324
  %v665 = vunpack.c.h.b16 %v324
  %v666 = vunpack.c.l.b16 %v325
  %v667 = vunpack.c.l.b16 %v326
  %v668 = vunpack.c.h.b16 %v326
  %v669 = vunpack.c.l.b16 %v327
  %v670 = vunpack.c.h.b16 %v327
  %v671 = vunpack.c.l.b16 %v328
  %v672 = vunpack.c.h.b16 %v328
  %v673 = vunpack.c.l.b16 %v329
  %v674 = vunpack.c.l.b16 %v330
  %v675 = vunpack.c.h.b16 %v330
  %v676 = vunpack.c.l.b16 %v331
  %v677 = vunpack.c.h.b16 %v331
  %v678 = vunpack.c.l.b16 %v332
  %v679 = vunpack.c.h.b16 %v332
  %v680 = vunpack.c.l.b16 %v333
  %v681 = vunpack.c.l.b16 %v334
  %v682 = vunpack.c.h.b16 %v334
  %v683 = vunpack.c.l.b16 %v335
  %v684 = vunpack.c.h.b16 %v335
  %v685 = vunpack.c.l.b16 %v336
  %v686 = vunpack.c.h.b16 %v336
  %v687 = vunpack.c.l.b16 %v337
  %v688 = vunpack.c.l.b16 %v338
  %v689 = vunpack.c.h.b16 %v338
  %v690 = vunpack.c.l.b16 %v339
  %v691 = vunpack.c.h.b16 %v339
  %v692 = vunpack.c.l.b16 %v340
  %v693 = vunpack.c.h.b16 %v340
  %v694 = vunpack.c.l.b16 %v341
  %v695 = vunpack.c.l.b16 %v342
  %v696 = vunpack.c.h.b16 %v342
  %v697 = vunpack.c.l.b16 %v343
  %v698 = vunpack.c.h.b16 %v343
  %v699 = vunpack.c.l.b16 %v344
  %v700 = vunpack.c.h.b16 %v344
  %v701 = vunpack.c.l.b16 %v345
  %v702 = vunpack.c.l.b16 %v346
  %v703 = vunpack.c.h.b16 %v346
  %v704 = vunpack.c.l.b16 %v347
  %v705 = vunpack.c.h.b16 %v347
  %v706 = vunpack.c.l.b16 %v348
  %v707 = vunpack.c.h.b16 %v348
  %v708 = vunpack.c.l.b16 %v349
  %v709 = vunpack.c.l.b16 %v350
  %v710 = vunpack.c.h.b16 %v350
  %v711 = vunpack.c.l.b16 %v351
  %v712 = vunpack.c.h.b16 %v351
  %v713 = vunpack.c.l.b16 %v352
  %v714 = vunpack.c.h.b16 %v352
  %v715 = vunpack.c.l.b16 %v353
  %v716 = vunpack.c.l.b16 %v354
  %v717 = vunpack.c.h.b16 %v354
  %v718 = vunpack.c.l.b16 %v355
  %v719 = vunpack.c.h.b16 %v355
  %v720 = vunpack.c.l.b16 %v356
  %v721 = vunpack.c.h.b16 %v356
  %v722 = vunpack.c.l.b16 %v357
  %v723 = vunpack.c.l.b16 %v358
  %v724 = vunpack.c.h.b16 %v358
  %v725 = vunpack.c.l.b16 %v359
  %v726 = vunpack.c.h.b16 %v359
  %v727 = vunpack.c.l.b16 %v360
  %v728 = vunpack.c.h.b16 %v360
  %v729 = vunpack.c.l.b16 %v361
  %v730 = vunpack.c.l.b16 %v362
  %v731 = vunpack.c.h.b16 %v362
  %v732 = vunpack.c.l.b16 %v363
  %v733 = vunpack.c.h.b16 %v363
  %v734 = vunpack.c.l.b16 %v364
  %v735 = vunpack.c.h.b16 %v364
  %v736 = vunpack.c.l.b16 %v365
  %v737 = vunpack.c.l.b16 %v366
  %v738 = vunpack.c.h.b16 %v366
  %v739 = vunpack.c.l.b16 %v367
  %v740 = vunpack.c.h.b16 %v367
  %v741 = vunpack.c.l.b16 %v368
  %v742 = vunpack.c.h.b16 %v368
  %v743 = vunpack.c.l.b16 %v369
  %v744 = vunpack.c.l.b16 %v370
  %v745 = vunpack.c.h.b16 %v370
  %v746 = vunpack.c.l.b16 %v371
  %v747 = vunpack.c.h.b16 %v371
  %v748 = vunpack.c.l.b16 %v372
  %v749 = vunpack.c.h.b16 %v372
  %v750 = vunpack.c.l.b16 %v373
  %v751 = vunpack.c.l.b16 %v374
  %v752 = vunpack.c.h.b16 %v374
  %v753 = vunpack.c.l.b16 %v375
  %v754 = vunpack.c.h.b16 %v375
  %v755 = vunpack.c.l.b16 %v376
  %v756 = vunpack.c.h.b16 %v376
  %v757 = vunpack.c.l.b16 %v377
  %v758 = vunpack.c.l.b16 %v378
  %v759 = vunpack.c.h.b16 %v378
  %v760 = vunpack.c.l.b16 %v379
  %v761 = vunpack.c.h.b16 %v379
  %v762 = vunpack.c.l.b16 %v380
  %v763 = vunpack.c.h.b16 %v380
  %v764 = vunpack.c.l.b16 %v381
  %v765 = vunpack.c.l.b16 %v382
  %v766 = vunpack.c.h.b16 %v382
  %v767 = vunpack.c.l.b16 %v383
  %v768 = vunpack.c.h.b16 %v383
  %v769 = vunpack.c.l.b16 %v384
  %v770 = vunpack.c.h.b16 %v384
  %v771 = vunpack.c.l.b16 %v385
  %v772 = vunpack.c.l.b16 %v386
  %v773 = vunpack.c.h.b16 %v386
  %v774 = vunpack.c.l.b16 %v387
  %v775 = vunpack.c.h.b16 %v387
  %v776 = vunpack.c.l.b16 %v388
  %v777 = vunpack.c.h.b16 %v388
  %v778 = vunpack.c.l.b16 %v389
  %v779 = vpack.c.b16 %v562, %v555
  %v780 = vpack.c.b16 %v563, %v556
  %v781 = vpack.c.b16 %v564, %v557
  %v782 = vpack.c.b16 %v565, %v558
  %v783 = vpack.c.b16 %v566, %v559
  %v784 = vpack.c.b16 %v567, %v560
  %v785 = vpack.c.b16 %v568, %v561
  %v786 = vpack.c.b16 %v576, %v569
  %v787 = vpack.c.b16 %v577, %v570
  %v788 = vpack.c.b16 %v578, %v571
  %v789 = vpack.c.b16 %v579, %v572
  %v790 = vpack.c.b16 %v580, %v573
  %v791 = vpack.c.b16 %v581, %v574
  %v792 = vpack.c.b16 %v582, %v575
  %v793 = vpack.c.b16 %v590, %v583
  %v794 = vpack.c.b16 %v591, %v584
  %v795 = vpack.c.b16 %v592, %v585
  %v796 = vpack.c.b16 %v593, %v586
  %v797 = vpack.c.b16 %v594, %v587
  %v798 = vpack.c.b16 %v595, %v588
  %v799 = vpack.c.b16 %v596, %v589
  %v800 = vpack.c.b16 %v604, %v597
  %v801 = vpack.c.b16 %v605, %v598
  %v802 = vpack.c.b16 %v606, %v599
  %v803 = vpack.c.b16 %v607, %v600
  %v804 = vpack.c.b16 %v608, %v601
  %v805 = vpack.c.b16 %v609, %v602
  %v806 = vpack.c.b16 %v610, %v603
  %v807 = vpack.c.b16 %v618, %v611
  %v808 = vpack.c.b16 %v619, %v612
  %v809 = vpack.c.b16 %v620, %v613
  %v810 = vpack.c.b16 %v621, %v614
  %v811 = vpack.c.b16 %v622, %v615
  %v812 = vpack.c.b16 %v623, %v616
  %v813 = vpack.c.b16 %v624, %v617
  %v814 = vpack.c.b16 %v632, %v625
  %v815 = vpack.c.b16 %v633, %v626
  %v816 = vpack.c.b16 %v634, %v627
  %v817 = vpack.c.b16 %v635, %v628
  %v818 = vpack.c.b16 %v636, %v629
  %v819 = vpack.c.b16 %v637, %v630
  %v820 = vpack.c.b16 %v638, %v631
  %v821 = vpack.c.b16 %v646, %v639
  %v822 = vpack.c.b16 %v647, %v640
  %v823 = vpack.c.b16 %v648, %v641
  %v824 = vpack.c.b16 %v649, %v642
  %v825 = vpack.c.b16 %v650, %v643
  %v826 = vpack.c.b16 %v651, %v644
  %v827 = vpack.c.b16 %v652, %v645
  %v828 = vpack.c.b16 %v660, %v653
  %v829 = vpack.c.b16 %v661, %v654
  %v830 = vpack.c.b16 %v662, %v655
  %v831 = vpack.c.b16 %v663, %v656
  %v832 = vpack.c.b16 %v664, %v657
  %v833 = vpack.c.b16 %v665, %v658
  %v834 = vpack.c.b16 %v666, %v659
  %v835 = vpack.c.b16 %v674, %v667
  %v836 = vpack.c.b16 %v675, %v668
  %v837 = vpack.c.b16 %v676, %v669
  %v838 = vpack.c.b16 %v677, %v670
  %v839 = vpack.c.b16 %v678, %v671
  %v840 = vpack.c.b16 %v679, %v672
  %v841 = vpack.c.b16 %v680, %v673
  %v842 = vpack.c.b16 %v688, %v681
  %v843 = vpack.c.b16 %v689, %v682
  %v844 = vpack.c.b16 %v690, %v683
  %v845 = vpack.c.b16 %v691, %v684
  %v846 = vpack.c.b16 %v692, %v685
  %v847 = vpack.c.b16 %v693, %v686
  %v848 = vpack.c.b16 %v694, %v687
  %v849 = vpack.c.b16 %v702, %v695
  %v850 = vpack.c.b16 %v703, %v696
  %v851 = vpack.c.b16 %v704, %v697
  %v852 = vpack.c.b16 %v705, %v698
  %v853 = vpack.c.b16 %v706, %v699
  %v854 = vpack.c.b16 %v707, %v700
  %v855 = vpack.c.b16 %v708, %v701
  %v856 = vpack.c.b16 %v716, %v709
  %v857 = vpack.c.b16 %v717, %v710
  %v858 = vpack.c.b16 %v718, %v711
  %v859 = vpack.c.b16 %v719, %v712
  %v860 = vpack.c.b16 %v720, %v713
  %v861 = vpack.c.b16 %v721, %v714
  %v862 = vpack.c.b16 %v722, %v715
  %v863 = vpack.c.b16 %v730, %v723
  %v864 = vpack.c.b16 %v731, %v724
  %v865 = vpack.c.b16 %v732, %v725
  %v866 = vpack.c.b16 %v733, %v726
  %v867 = vpack.c.b16 %v734, %v727
  %v868 = vpack.c.b16 %v735, %v728
  %v869 = vpack.c.b16 %v736, %v729
  %v870 = vpack.c.b16 %v744, %v737
  %v871 = vpack.c.b16 %v745, %v738
  %v872 = vpack.c.b16 %v746, %v739
  %v873 = vpack.c.b16 %v747, %v740
  %v874 = vpack.c.b16 %v748, %v741
  %v875 = vpack.c.b16 %v749, %v742
  %v876 = vpack.c.b16 %v750, %v743
  %v877 = vpack.c.b16 %v758, %v751
  %v878 = vpack.c.b16 %v759, %v752
  %v879 = vpack.c.b16 %v760, %v753
  %v880 = vpack.c.b16 %v761, %v754
  %v881 = vpack.c.b16 %v762, %v755
  %v882 = vpack.c.b16 %v763, %v756
  %v883 = vpack.c.b16 %v764, %v757
  %v884 = vpack.c.b16 %v772, %v765
  %v885 = vpack.c.b16 %v773, %v766
  %v886 = vpack.c.b16 %v774, %v767
  %v887 = vpack.c.b16 %v775, %v768
  %v888 = vpack.c.b16 %v776, %v769
  %v889 = vpack.c.b16 %v777, %v770
  %v890 = vpack.c.b16 %v778, %v771
  %1003 = vmatprep.subr.bf16.mxu0 %v780
  %1004 = vmatpush1.bf16.msra.mxu0 %v779
  %1005 = vmatprep.subr.bf16.mxu0 %v787
  %1006 = vmatpush1.bf16.msra.mxu0 %v786
  %1007 = vmatprep.subr.bf16.mxu0 %v794
  %1008 = vmatpush1.bf16.msra.mxu0 %v793
  %1009 = vmatprep.subr.bf16.mxu0 %v801
  %1010 = vmatpush1.bf16.msra.mxu0 %v800
  %1011 = vmatprep.subr.bf16.mxu0 %v808
  %1012 = vmatpush1.bf16.msra.mxu0 %v807
  %1013 = vmatprep.subr.bf16.mxu0 %v815
  %1014 = vmatpush1.bf16.msra.mxu0 %v814
  %1015 = vmatprep.subr.bf16.mxu0 %v822
  %1016 = vmatpush1.bf16.msra.mxu0 %v821
  %1017 = vmatprep.subr.bf16.mxu0 %v829
  %1018 = vmatpush1.bf16.msra.mxu0 %v828
  %1019 = vmatprep.subr.bf16.mxu0 %v836
  %1020 = vmatpush1.bf16.msra.mxu0 %v835
  %1021 = vmatprep.subr.bf16.mxu0 %v843
  %1022 = vmatpush1.bf16.msra.mxu0 %v842
  %1023 = vmatprep.subr.bf16.mxu0 %v850
  %1024 = vmatpush1.bf16.msra.mxu0 %v849
  %1025 = vmatprep.subr.bf16.mxu0 %v857
  %1026 = vmatpush1.bf16.msra.mxu0 %v856
  %1027 = vmatprep.subr.bf16.mxu0 %v864
  %1028 = vmatpush1.bf16.msra.mxu0 %v863
  %1029 = vmatprep.subr.bf16.mxu0 %v871
  %1030 = vmatpush1.bf16.msra.mxu0 %v870
  %1031 = vmatprep.subr.bf16.mxu0 %v878
  %1032 = vmatpush1.bf16.msra.mxu0 %v877
  %1033 = vmatprep.subr.bf16.mxu0 %v885
  %1034 = vmatpush1.bf16.msra.mxu0 %v884
  %1035 = vmatprep.mubr.bf16.mxu0 %v261
  %1036 = vmatmul.mubr.bf16.gmra.mrb[0].mxu0 %v260
  %v1037 = vpop.f32.mrb[0].mxu0
  %v1038 = vadd.f32 %v395, %v1037
  %v1039 = vpop.f32.mrb[0].mxu0
  %v1040 = vadd.f32 %v399, %v1039
  %v1041 = vpop.f32.mrb[0].mxu0
  %v1042 = vadd.f32 %v395, %v1041
  %v1043 = vpop.f32.mrb[0].mxu0
  %v1044 = vadd.f32 %v399, %v1043
  %1045 = vdwg.mxu0
  %1046 = vmatprep.subr.bf16.mxu0 %v782
  %1047 = vmatpush1.bf16.msra.mxu0 %v781
  %1048 = vmatprep.subr.bf16.mxu0 %v789
  %1049 = vmatpush1.bf16.msra.mxu0 %v788
  %1050 = vmatprep.subr.bf16.mxu0 %v796
  %1051 = vmatpush1.bf16.msra.mxu0 %v795
  %1052 = vmatprep.subr.bf16.mxu0 %v803
  %1053 = vmatpush1.bf16.msra.mxu0 %v802
  %1054 = vmatprep.subr.bf16.mxu0 %v810
  %1055 = vmatpush1.bf16.msra.mxu0 %v809
  %1056 = vmatprep.subr.bf16.mxu0 %v817
  %1057 = vmatpush1.bf16.msra.mxu0 %v816
  %1058 = vmatprep.subr.bf16.mxu0 %v824
  %1059 = vmatpush1.bf16.msra.mxu0 %v823
  %1060 = vmatprep.subr.bf16.mxu0 %v831
  %1061 = vmatpush1.bf16.msra.mxu0 %v830
  %1062 = vmatprep.subr.bf16.mxu0 %v838
  %1063 = vmatpush1.bf16.msra.mxu0 %v837
  %1064 = vmatprep.subr.bf16.mxu0 %v845
  %1065 = vmatpush1.bf16.msra.mxu0 %v844
  %1066 = vmatprep.subr.bf16.mxu0 %v852
  %1067 = vmatpush1.bf16.msra.mxu0 %v851
  %1068 = vmatprep.subr.bf16.mxu0 %v859
  %1069 = vmatpush1.bf16.msra.mxu0 %v858
  %1070 = vmatprep.subr.bf16.mxu0 %v866
  %1071 = vmatpush1.bf16.msra.mxu0 %v865
  %1072 = vmatprep.subr.bf16.mxu0 %v873
  %1073 = vmatpush1.bf16.msra.mxu0 %v872
  %1074 = vmatprep.subr.bf16.mxu0 %v880
  %1075 = vmatpush1.bf16.msra.mxu0 %v879
  %1076 = vmatprep.subr.bf16.mxu0 %v887
  %1077 = vmatpush1.bf16.msra.mxu0 %v886
  %1078 = vmatprep.mubr.bf16.mxu0 %v261
  %1079 = vmatmul.mubr.bf16.gmra.mrb[0].mxu0 %v260
  %v1080 = vpop.f32.mrb[0].mxu0
  %v1081 = vadd.f32 %v403, %v1080
  %v1082 = vpop.f32.mrb[0].mxu0
  %v1083 = vadd.f32 %v407, %v1082
  %v1084 = vpop.f32.mrb[0].mxu0
  %v1085 = vadd.f32 %v403, %v1084
  %v1086 = vpop.f32.mrb[0].mxu0
  %v1087 = vadd.f32 %v407, %v1086
  %1088 = vdwg.mxu0
  %1089 = vmatprep.subr.bf16.mxu0 %v784
  %1090 = vmatpush1.bf16.msra.mxu0 %v783
  %1091 = vmatprep.subr.bf16.mxu0 %v791
  %1092 = vmatpush1.bf16.msra.mxu0 %v790
  %1093 = vmatprep.subr.bf16.mxu0 %v798
  %1094 = vmatpush1.bf16.msra.mxu0 %v797
  %1095 = vmatprep.subr.bf16.mxu0 %v805
  %1096 = vmatpush1.bf16.msra.mxu0 %v804
  %1097 = vmatprep.subr.bf16.mxu0 %v812
  %1098 = vmatpush1.bf16.msra.mxu0 %v811
  %1099 = vmatprep.subr.bf16.mxu0 %v819
  %1100 = vmatpush1.bf16.msra.mxu0 %v818
  %1101 = vmatprep.subr.bf16.mxu0 %v826
  %1102 = vmatpush1.bf16.msra.mxu0 %v825
  %1103 = vmatprep.subr.bf16.mxu0 %v833
  %1104 = vmatpush1.bf16.msra.mxu0 %v832
  %1105 = vmatprep.subr.bf16.mxu0 %v840
  %1106 = vmatpush1.bf16.msra.mxu0 %v839
  %1107 = vmatprep.subr.bf16.mxu0 %v847
  %1108 = vmatpush1.bf16.msra.mxu0 %v846
  %1109 = vmatprep.subr.bf16.mxu0 %v854
  %1110 = vmatpush1.bf16.msra.mxu0 %v853
  %1111 = vmatprep.subr.bf16.mxu0 %v861
  %1112 = vmatpush1.bf16.msra.mxu0 %v860
  %1113 = vmatprep.subr.bf16.mxu0 %v868
  %1114 = vmatpush1.bf16.msra.mxu0 %v867
  %1115 = vmatprep.subr.bf16.mxu0 %v875
  %1116 = vmatpush1.bf16.msra.mxu0 %v874
  %1117 = vmatprep.subr.bf16.mxu0 %v882
  %1118 = vmatpush1.bf16.msra.mxu0 %v881
  %1119 = vmatprep.subr.bf16.mxu0 %v889
  %1120 = vmatpush1.bf16.msra.mxu0 %v888
  %1121 = vmatprep.mubr.bf16.mxu0 %v261
  %1122 = vmatmul.mubr.bf16.gmra.mrb[0].mxu0 %v260
  %v1123 = vpop.f32.mrb[0].mxu0
  %v1124 = vadd.f32 %v411, %v1123
  %v1125 = vpop.f32.mrb[0].mxu0
  %v1126 = vadd.f32 %v415, %v1125
  %v1127 = vpop.f32.mrb[0].mxu0
  %v1128 = vadd.f32 %v411, %v1127
  %v1129 = vpop.f32.mrb[0].mxu0
  %v1130 = vadd.f32 %v415, %v1129
  %1131 = vdwg.mxu0
  %1132 = vmatprep.subr.bf16.mxu0 0
  %1133 = vmatpush1.bf16.msra.mxu0 %v785
  %1134 = vmatprep.subr.bf16.mxu0 0
  %1135 = vmatpush1.bf16.msra.mxu0 %v792
  %1136 = vmatprep.subr.bf16.mxu0 0
  %1137 = vmatpush1.bf16.msra.mxu0 %v799
  %1138 = vmatprep.subr.bf16.mxu0 0
  %1139 = vmatpush1.bf16.msra.mxu0 %v806
  %1140 = vmatprep.subr.bf16.mxu0 0
  %1141 = vmatpush1.bf16.msra.mxu0 %v813
  %1142 = vmatprep.subr.bf16.mxu0 0
  %1143 = vmatpush1.bf16.msra.mxu0 %v820
  %1144 = vmatprep.subr.bf16.mxu0 0
  %1145 = vmatpush1.bf16.msra.mxu0 %v827
  %1146 = vmatprep.subr.bf16.mxu0 0
  %1147 = vmatpush1.bf16.msra.mxu0 %v834
  %1148 = vmatprep.subr.bf16.mxu0 0
  %1149 = vmatpush1.bf16.msra.mxu0 %v841
  %1150 = vmatprep.subr.bf16.mxu0 0
  %1151 = vmatpush1.bf16.msra.mxu0 %v848
  %1152 = vmatprep.subr.bf16.mxu0 0
  %1153 = vmatpush1.bf16.msra.mxu0 %v855
  %1154 = vmatprep.subr.bf16.mxu0 0
  %1155 = vmatpush1.bf16.msra.mxu0 %v862
  %1156 = vmatprep.subr.bf16.mxu0 0
  %1157 = vmatpush1.bf16.msra.mxu0 %v869
  %1158 = vmatprep.subr.bf16.mxu0 0
  %1159 = vmatpush1.bf16.msra.mxu0 %v876
  %1160 = vmatprep.subr.bf16.mxu0 0
  %1161 = vmatpush1.bf16.msra.mxu0 %v883
  %1162 = vmatprep.subr.bf16.mxu0 0
  %1163 = vmatpush1.bf16.msra.mxu0 %v890
  %1164 = vmatprep.mubr.bf16.mxu0 %v261
  %1165 = vmatmul.mubr.bf16.gmra.mrb[0].mxu0 %v260
  %v1166 = vpop.f32.mrb[0].mxu0
  %v1167 = vadd.f32 %v419, %v1166
  %v1168 = vpop.f32.mrb[0].mxu0
  %v1169 = vpop.f32.mrb[0].mxu0
  %v1170 = vadd.f32 %v419, %v1169
  %v1171 = vpop.f32.mrb[0].mxu0
  %1172 = vdwg.mxu0
  %v1173 = vtanh.pop %v1038
  %v1174 = vtanh.pop %v1040
  %v1175 = vtanh.pop %v1081
  %v1176 = vtanh.pop %v1083
  %v1177 = vtanh.pop %v1124
  %v1178 = vtanh.pop %v1126
  %v1179 = vtanh.pop %v1167
  %v1180 = vtanh.pop %v1042
  %v1181 = vtanh.pop %v1044
  %v1182 = vtanh.pop %v1085
  %v1183 = vtanh.pop %v1087
  %v1184 = vtanh.pop %v1128
  %v1185 = vtanh.pop %v1130
  %v1186 = vtanh.pop %v1170
  %v1187 = vmul.f32 %v1173, 0.5
  %v1188 = vmul.f32 %v1174, 0.5
  %v1189 = vmul.f32 %v1175, 0.5
  %v1190 = vmul.f32 %v1176, 0.5
  %v1191 = vmul.f32 %v1177, 0.5
  %v1192 = vmul.f32 %v1178, 0.5
  %v1193 = vmul.f32 %v1179, 0.5
  %v1194 = vmul.f32 %v1180, 0.5
  %v1195 = vmul.f32 %v1181, 0.5
  %v1196 = vmul.f32 %v1182, 0.5
  %v1197 = vmul.f32 %v1183, 0.5
  %v1198 = vmul.f32 %v1184, 0.5
  %v1199 = vmul.f32 %v1185, 0.5
  %v1200 = vmul.f32 %v1186, 0.5
  %v1201 = vadd.f32 %v1187, 0.5
  %v1202 = vadd.f32 %v1188, 0.5
  %v1203 = vadd.f32 %v1189, 0.5
  %v1204 = vadd.f32 %v1190, 0.5
  %v1205 = vadd.f32 %v1191, 0.5
  %v1206 = vadd.f32 %v1192, 0.5
  %v1207 = vadd.f32 %v1193, 0.5
  %v1208 = vadd.f32 %v1194, 0.5
  %v1209 = vadd.f32 %v1195, 0.5
  %v1210 = vadd.f32 %v1196, 0.5
  %v1211 = vadd.f32 %v1197, 0.5
  %v1212 = vadd.f32 %v1198, 0.5
  %v1213 = vadd.f32 %v1199, 0.5
  %v1214 = vadd.f32 %v1200, 0.5
  %v1215 = vpack.c.bf16 %v1208, %v1201
  %v1216 = vpack.c.bf16 %v1209, %v1202
  %v1217 = vpack.c.bf16 %v1210, %v1203
  %v1218 = vpack.c.bf16 %v1211, %v1204
  %v1219 = vpack.c.bf16 %v1212, %v1205
  %v1220 = vpack.c.bf16 %v1213, %v1206
  %v1221 = vpack.c.bf16 %v1214, %v1207
  %v1229 = vunpack.c.l.b16 %v1215
  %v1230 = vunpack.c.l.b16 %v1216
  %v1231 = vunpack.c.l.b16 %v1217
  %v1232 = vunpack.c.l.b16 %v1218
  %v1233 = vunpack.c.l.b16 %v1219
  %v1234 = vunpack.c.l.b16 %v1220
  %v1235 = vunpack.c.l.b16 %v1221
  %v1236 = vunpack.c.h.b16 %v1215
  %v1237 = vunpack.c.h.b16 %v1216
  %v1238 = vunpack.c.h.b16 %v1217
  %v1239 = vunpack.c.h.b16 %v1218
  %v1240 = vunpack.c.h.b16 %v1219
  %v1241 = vunpack.c.h.b16 %v1220
  %v1242 = vunpack.c.h.b16 %v1221
  %v1243 = vpack.c.b16 %v1230, %v1229
  %v1244 = vpack.c.b16 %v1232, %v1231
  %v1245 = vpack.c.b16 %v1234, %v1233
  %v1246 = vpack.c.b16 %v1235, %v1235
  %v1247 = vpack.c.b16 %v1237, %v1236
  %v1248 = vpack.c.b16 %v1239, %v1238
  %v1249 = vpack.c.b16 %v1241, %v1240
  %v1250 = vpack.c.b16 %v1242, %v1242
  %1259 = vst [vmem:[%s7] sm:$0xff] %v1243
  %1260 = vst [vmem:[%s7 + $0x8] sm:$0xff] %v1244
  %1261 = vst [vmem:[%s7 + $0x10] sm:$0xff] %v1245
  %vm1262 = vcmask 125952
  %1263 = vst.msk [vmem:[%s7 + $0x18] sm:$0xf] %vm1262, %v1246
  %1264 = vst [vmem:[%s7 + $0x1c] sm:$0xff] %v1247
  %1265 = vst [vmem:[%s7 + $0x24] sm:$0xff] %v1248
  %1266 = vst [vmem:[%s7 + $0x2c] sm:$0xff] %v1249
  %1267 = vst.msk [vmem:[%s7 + $0x34] sm:$0xf] %vm1262, %v1250
  // Predicated region
  $region30: #{decoder_forward.1} parent=0 // pred_check
    _
  $region31: #{decoder_forward.1} parent=0 // pred_check_branch
    %1269 = sbr.rel (0) target = $region33
  $region32: #{decoder_forward.1} parent=0 // pred_region
    _
  $region33: #{decoder_forward.1} parent=0 // pred_fallthru
    _
  // Predicated region
  $region34: #{decoder_forward.1} parent=0 // pred_check
    _
  $region35: #{decoder_forward.1} parent=0 // pred_check_branch
    %1271 = sbr.rel (0) target = $region37
  $region36: #{decoder_forward.1} parent=0 // pred_region
    _
  $region37: #{decoder_forward.1} parent=0 // pred_fallthru
    _

</llo_original>
